<compile_context>
chip_gen: v5e
topology: v5e:2x2
jax: 0.10.0
libtpu: 0.0.40
codegen_flags: <defaults>
</compile_context>

<pallas_src>
import jax
import jax.numpy as jnp
from jax.experimental import pallas as pl
from jax.experimental.pallas import tpu as pltpu


def _merge_kernel(w_ref, bias_ref, m_ref, x_ref, y_ref, o_ref):
    # w_ref: (TC, 3) f32 VMEM, bias_ref: (TC, 1) f32 VMEM, data refs: (TC, TL) tiles.
    w = w_ref[...]
    wm, wx, wy = w[:, 0:1], w[:, 1:2], w[:, 2:3]   # hoisted lane-broadcast temps
    acc = (wm * m_ref[...].astype(jnp.float32)
           + wx * x_ref[...].astype(jnp.float32)
           + wy * y_ref[...].astype(jnp.float32)
           + bias_ref[...])
    o_ref[...] = acc.astype(o_ref.dtype)


def _pick_tile(n, unit, max_elems):
    """Largest divisor of `n` that is a multiple of `unit` and <= max_elems.

    Fallbacks: `unit` itself if it divides n (keeps the VMEM footprint tiny), else the
    full dim n (full-extent blocks are exempt from the (8,128) rule)."""
    best = None
    d = unit
    limit = min(n, max_elems)
    while d <= limit:
        if n % d == 0:
            best = d
        d += unit
    if best is not None:
        return best
    return unit if n % unit == 0 else n


def general_merge_block(m, x, y, weight, bias):
    """weight: (C, 3) or (C, 3, 1, 1); bias: (C,); m/x/y: (B, C, H, W)."""
    # TODO(synk): pre_bn=True branch (two BatchNorm2d) not implemented; module default is
    # pre_bn=False so this matches the default forward path.
    B, C, H, W = x.shape
    HW = H * W
    R = B * C
    itemsize = jnp.dtype(x.dtype).itemsize

    w2d = jnp.asarray(weight, jnp.float32).reshape(C, 3)
    b2d = jnp.asarray(bias, jnp.float32).reshape(C, 1)
    # Broadcast per-channel params across batches so the grid drops the batch axis
    # (row r = b*C + c  <->  channel c = r % C). Only a few KB.
    w_rows = jnp.tile(w2d, (B, 1))                       # (R, 3)
    b_rows = jnp.tile(b2d, (B, 1))                       # (R, 1)

    # Flatten to (R, HW) (free view for contiguous NCHW) and zero-pad the lane axis to a
    # multiple of 128 -> every output block stores full-width (no vst.msk partial stores).
    HW_pad = ((HW + 127) // 128) * 128
    pad = HW_pad - HW

    def prep(a):
        a = a.reshape(R, HW)
        return jnp.pad(a, ((0, 0), (0, pad))) if pad else a

    m2, x2, y2 = prep(m), prep(x), prep(y)

    # Generation-aware VMEM sizing.
    try:
        vmem_cap = int(pltpu.get_tpu_info().vmem_capacity_bytes)
    except Exception:
        vmem_cap = 64 * 1024 * 1024                      # conservative (v7x per-TC VMEM)
    if vmem_cap >= 128 * 1024 * 1024:                    # v5e / v6e
        max_tile_bytes = 4 * 1024 * 1024
        vmem_limit = 64 * 1024 * 1024
    else:                                                # v7x (or unknown): cap tiles
        max_tile_bytes = 2 * 1024 * 1024
        vmem_limit = min(48 * 1024 * 1024, (vmem_cap * 3) // 4)
    max_tile_elems = max(128, max_tile_bytes // itemsize)

    # Spatial tile first, as big as the budget allows (ideally full HW_pad): one fully
    # contiguous HBM run per operand per step. Channels fill the remaining budget.
    tl = HW_pad if HW_pad <= max_tile_elems else _pick_tile(HW_pad, 128, max_tile_elems)
    row_budget = max(1, max_tile_elems // tl)
    tc = R if R <= row_budget else _pick_tile(R, 8, row_budget)

    # Keep the parallel grid extent >= 2 so dual-TC chips (v7x) shard across both cores.
    if (R // tc) * (HW_pad // tl) == 1:
        if tl % 256 == 0:
            tl //= 2
        elif tc % 16 == 0:
            tc //= 2

    grid = (R // tc, HW_pad // tl)
    data_spec = pl.BlockSpec((tc, tl), lambda r, s: (r, s))
    w_spec = pl.BlockSpec((tc, 3), lambda r, s: (r, 0))
    b_spec = pl.BlockSpec((tc, 1), lambda r, s: (r, 0))
    # (Optional knob for very small tiles: pipeline_mode=pl.Buffered(3) on the data specs;
    #  skipped here — bigger tiles are preferred and compute has large slack vs HBM.)

    cost = pl.CostEstimate(
        flops=6 * R * HW_pad,                            # 3 mul + 3 add per output elem
        transcendentals=0,
        bytes_accessed=4 * R * HW_pad * itemsize + R * 4 * 4,
    )

    out = pl.pallas_call(
        _merge_kernel,
        out_shape=jax.ShapeDtypeStruct((R, HW_pad), x.dtype),
        grid=grid,
        in_specs=[w_spec, b_spec, data_spec, data_spec, data_spec],
        out_specs=data_spec,
        compiler_params=pltpu.CompilerParams(
            dimension_semantics=("parallel", "parallel"),
            vmem_limit_bytes=vmem_limit,
        ),
        cost_estimate=cost,
    )(w_rows, b_rows, m2, x2, y2)

    if pad:
        out = out[:, :HW]
    return out.reshape(B, C, H, W)


if __name__ == "__main__":
    def _ref(m, x, y, conv_w, conv_b):
        w = conv_w.reshape(conv_w.shape[0], 3)
        return (w[:, 0][None, :, None, None] * m
                + w[:, 1][None, :, None, None] * x
                + w[:, 2][None, :, None, None] * y
                + conv_b[None, :, None, None])

    key = jax.random.PRNGKey(0)
    ok = True
    # Second shape exercises the non-multiple-of-128 (padded, lane-dense) path.
    for (B, C, H, W) in [(2, 4, 16, 16), (1, 4, 14, 14)]:
        key, k1, k2, k3, k4, k5 = jax.random.split(key, 6)
        m = jax.random.normal(k1, (B, C, H, W), dtype=jnp.float32)
        x = jax.random.normal(k2, (B, C, H, W), dtype=jnp.float32)
        y = jax.random.normal(k3, (B, C, H, W), dtype=jnp.float32)
        # Deterministic synthetic conv params (init_conv not provided); PyTorch weight
        # shape is (C_out, C_in/groups, 1, 1) = (C, 3, 1, 1).
        conv_w = (jnp.float32(1.0 / 3.0)
                  + 0.1 * jax.random.normal(k4, (C, 3, 1, 1), dtype=jnp.float32))
        conv_b = 0.01 * jax.random.normal(k5, (C,), dtype=jnp.float32)

        out = jax.block_until_ready(general_merge_block(m, x, y, conv_w, conv_b))
        ref = _ref(m, x, y, conv_w, conv_b)
        ok = ok and out.shape == (B, C, H, W) and out.dtype == jnp.float32
        ok = ok and bool(jnp.allclose(out, ref, atol=1e-5, rtol=1e-5))

    assert ok
    print("KERNEL_OK")
</pallas_src>

<mosaic_0001>
module attributes {stable_mosaic.version = 11 : i64} {
  func.func @_merge_kernel(%arg0: i32, %arg1: i32, %arg2: memref<8x3xf32, #tpu.memory_space<vmem>>, %arg3: memref<8x1xf32, #tpu.memory_space<vmem>>, %arg4: memref<8x128xf32, #tpu.memory_space<vmem>>, %arg5: memref<8x128xf32, #tpu.memory_space<vmem>>, %arg6: memref<8x128xf32, #tpu.memory_space<vmem>>, %arg7: memref<8x128xf32, #tpu.memory_space<vmem>>) attributes {dimension_semantics = [#tpu.dimension_semantics<parallel>, #tpu.dimension_semantics<parallel>], iteration_bounds = array<i64: 1, 2>, scalar_prefetch = 0 : i64, scratch_operands = 0 : i64, tpu.core_type = #tpu.core_type<tc>, window_params = [{transform_indices = @transform_0, window_bounds = array<i64: 8, 3>}, {transform_indices = @transform_1, window_bounds = array<i64: 8, 1>}, {transform_indices = @transform_2, window_bounds = array<i64: 8, 128>}, {transform_indices = @transform_3, window_bounds = array<i64: 8, 128>}, {transform_indices = @transform_4, window_bounds = array<i64: 8, 128>}, {transform_indices = @transform_5, window_bounds = array<i64: 8, 128>}]} {
    %c0 = arith.constant 0 : index
    %c0_0 = arith.constant 0 : index
    %0 = vector.load %arg2[%c0, %c0_0] : memref<8x3xf32, #tpu.memory_space<vmem>>, vector<8x3xf32>
    %1 = vector.extract_strided_slice %0 {offsets = [0, 0], sizes = [8, 1], strides = [1, 1]} : vector<8x3xf32> to vector<8x1xf32>
    %2 = vector.extract_strided_slice %0 {offsets = [0, 1], sizes = [8, 1], strides = [1, 1]} : vector<8x3xf32> to vector<8x1xf32>
    %3 = vector.extract_strided_slice %0 {offsets = [0, 2], sizes = [8, 1], strides = [1, 1]} : vector<8x3xf32> to vector<8x1xf32>
    %c0_1 = arith.constant 0 : index
    %c0_2 = arith.constant 0 : index
    %4 = vector.load %arg4[%c0_1, %c0_2] : memref<8x128xf32, #tpu.memory_space<vmem>>, vector<8x128xf32>
    %5 = vector.broadcast %1 : vector<8x1xf32> to vector<8x128xf32>
    %6 = arith.mulf %5, %4 : vector<8x128xf32>
    %c0_3 = arith.constant 0 : index
    %c0_4 = arith.constant 0 : index
    %7 = vector.load %arg5[%c0_3, %c0_4] : memref<8x128xf32, #tpu.memory_space<vmem>>, vector<8x128xf32>
    %8 = vector.broadcast %2 : vector<8x1xf32> to vector<8x128xf32>
    %9 = arith.mulf %8, %7 : vector<8x128xf32>
    %10 = arith.addf %6, %9 : vector<8x128xf32>
    %c0_5 = arith.constant 0 : index
    %c0_6 = arith.constant 0 : index
    %11 = vector.load %arg6[%c0_5, %c0_6] : memref<8x128xf32, #tpu.memory_space<vmem>>, vector<8x128xf32>
    %12 = vector.broadcast %3 : vector<8x1xf32> to vector<8x128xf32>
    %13 = arith.mulf %12, %11 : vector<8x128xf32>
    %14 = arith.addf %10, %13 : vector<8x128xf32>
    %c0_7 = arith.constant 0 : index
    %c0_8 = arith.constant 0 : index
    %15 = vector.load %arg3[%c0_7, %c0_8] : memref<8x1xf32, #tpu.memory_space<vmem>>, vector<8x1xf32>
    %16 = vector.broadcast %15 : vector<8x1xf32> to vector<8x128xf32>
    %17 = arith.addf %14, %16 : vector<8x128xf32>
    %c0_9 = arith.constant 0 : index
    %c0_10 = arith.constant 0 : index
    %18 = vector.load %arg7[%c0_9, %c0_10] : memref<8x128xf32, #tpu.memory_space<vmem>>, vector<8x128xf32>
    tpu.vector_store %arg7[%c0_9, %c0_10], %17 {strides = array<i32>} : memref<8x128xf32, #tpu.memory_space<vmem>>, vector<8x128xf32>,
    return
  }
  func.func @transform_0(%arg0: i32, %arg1: i32) -> (i32, i32) {
    %c0_i32 = arith.constant 0 : i32
    %c0_i32_0 = arith.constant 0 : i32
    return %arg0, %c0_i32 : i32, i32
  }
  func.func @transform_1(%arg0: i32, %arg1: i32) -> (i32, i32) {
    %c0_i32 = arith.constant 0 : i32
    %c0_i32_0 = arith.constant 0 : i32
    return %arg0, %c0_i32 : i32, i32
  }
  func.func @transform_2(%arg0: i32, %arg1: i32) -> (i32, i32) {
    %c0_i32 = arith.constant 0 : i32
    return %arg0, %arg1 : i32, i32
  }
  func.func @transform_3(%arg0: i32, %arg1: i32) -> (i32, i32) {
    %c0_i32 = arith.constant 0 : i32
    return %arg0, %arg1 : i32, i32
  }
  func.func @transform_4(%arg0: i32, %arg1: i32) -> (i32, i32) {
    %c0_i32 = arith.constant 0 : i32
    return %arg0, %arg1 : i32, i32
  }
  func.func @transform_5(%arg0: i32, %arg1: i32) -> (i32, i32) {
    %c0_i32 = arith.constant 0 : i32
    return %arg0, %arg1 : i32, i32
  }
}

</mosaic_0001>

<llo_original>
// kernel: tpu_custom_call.1
$region0: #{tpu_custom_call.1}
  #allocation0 [shape = 'u32[]', space=smem, size = 0x4, offset = 0x4, fixed_abs, tag = 'smem constant byte address 0x4 - core index']
  #allocation1 [shape = 'u32[72,128]{1,0:T(1,128)}', space=vmem, size = 0x9000, scoped, tag = 'internal scratch']
  %s0 = inlined_call_operand.vmem [shape: f32[8,3], index: 0, kind: input, shape index: {}]
  %s1 = inlined_call_operand.vmem [shape: f32[8,1], index: 1, kind: input, shape index: {}]
  %s2 = inlined_call_operand.vmem [shape: f32[8,256], index: 2, kind: input, shape index: {}]
  %s3 = inlined_call_operand.hbm [shape: f32[8,256], index: 3, kind: input, shape index: {}]
  %s4 = inlined_call_operand.hbm [shape: f32[8,256], index: 4, kind: input, shape index: {}]
  %s5 = inlined_call_operand.hbm [shape: f32[8,256], index: 5, kind: output, shape index: {}]
  %s6 = sld [smem:[#allocation0]]
  $region61: #{tpu_custom_call.1} parent=0
    _
  %s8 = ssub.s32 1, %s6
  %s9 = scalar_select 0, %s8, %s6
  $region1: #{tpu_custom_call.1} parent=0
    #allocation2 [shape = 'u8[8192]{0}', space=vmem, size = 0x2000, scoped, tag = 'input window, operand 3']
    #allocation3 [shape = 's32[2]{0}', space=sflag, size = 0x8, scoped, tag = 'scoped memory for tpu_custom_call.1']
    #allocation4 [shape = 's32[2]{0}', space=sflag, size = 0x8, scoped, tag = 'scoped memory for tpu_custom_call.1']
    #allocation5 [shape = 'u8[8192]{0}', space=vmem, size = 0x2000, scoped, tag = 'input window, operand 4']
    #allocation6 [shape = 's32[2]{0}', space=sflag, size = 0x8, scoped, tag = 'scoped memory for tpu_custom_call.1']
    #allocation7 [shape = 'u8[8192]{0}', space=vmem, size = 0x2000, scoped, tag = 'output window, operand 0']
    %10 = vsyncpa [#allocation3], 0
    %s11 = scalar_lea.sflag [#allocation3], 1
    %12 = vsyncpa %s11, 0
    %13 = vsyncpa [#allocation6], 0
    %s14 = scalar_lea.sflag [#allocation6], 1
    %15 = vsyncpa %s14, 0
    %16 = vsyncpa [#allocation4], 0
    %s17 = scalar_lea.sflag [#allocation4], 1
    %18 = vsyncpa %s17, 0
    loop: start=0, step=1, limit=4
    $region2: #{tpu_custom_call.1} parent=1 // loop_pre_header
      _
    $region3: #{tpu_custom_call.1} parent=1 // loop_header
      %s20 = sphi 0, %s24
      %p21 = scmp.ge.s32.totalorder %s20, 4
      %s27 = sphi 0, %s39
      %s28 = sphi 0, %s35
      %s29 = sphi 0, %s27
      %s30 = sphi 0, %s28
      %s31 = sphi 0, %s29
      %s32 = sphi 0, %s30
      %s42 = sphi 0, %s44
      %s45 = sphi 0, %s42
      %s46 = sphi 0, %s45
      %s62 = sphi 0, %s46
      %s68 = sphi 0, %s70
      %s71 = sphi 0, %s68
      %s72 = sphi 0, %s71
      %s88 = sphi 0, %s72
      %s96 = sphi 0, %s98
      %s99 = sphi 0, %s96
      %s100 = sphi 0, %s99
      %s116 = sphi 0, %s100
      %s124 = sphi 0, %s126
      %s127 = sphi 0, %s124
      %s128 = sphi 0, %s127
      %s144 = sphi 0, %s128
      %s152 = sphi 0, %s154
      %s155 = sphi 0, %s152
      %s156 = sphi 0, %s155
      %s172 = sphi 0, %s156
      %s180 = sphi 0, %s182
      %s183 = sphi 0, %s180
      %s184 = sphi 0, %s183
      %s200 = sphi 0, %s184
    $region4: #{tpu_custom_call.1} parent=1 // loop_header_branch
      %23 = sbr.rel (%p21) target = $region8
    $region5: #{tpu_custom_call.1} parent=1 // loop_body
      %s25 = ssub.s32 %s20, 1
      %s26 = ssub.s32 %s20, 2
      %s33 = sadd.s32 1, %s28
      %p34 = scmp.ge.s32.totalorder %s33, 2
      %s35 = scalar_select %p34, 0, %s33
      %s36 = sadd.s32 1, %s27
      %s37 = scalar_select %p34, %s36, %s27
      %p38 = scmp.ge.s32.totalorder %s37, 1
      %s39 = scalar_select %p38, 0, %s37
      %s40 = ssub.s32 %s27, %s39
      %p41 = scmp.eq.s32.totalorder %s40, 0
      %s43 = sadd.s32 %s42, 1
      %s44 = scalar_select %p41, %s42, %s43
      %p47 = pneg %p41
      %p48 = scmp.eq.s32.totalorder %s20, 1
      %p49 = por %p47, %p48
      %p50 = scmp.ne.s32.totalorder %s42, %s45
      %p51 = scmp.eq.s32.totalorder %s20, 0
      %p52 = por %p50, %p51
      %p53 = scmp.ne.s32.totalorder %s42, %s45
      %p54 = scmp.eq.s32.totalorder %s25, 1
      %p55 = por %p53, %p54
      %p56 = scmp.ne.s32.totalorder %s45, %s46
      %p57 = scmp.eq.s32.totalorder %s25, 0
      %p58 = por %p56, %p57
      %p59 = scmp.ne.s32.totalorder %s45, %s46
      %p60 = scmp.eq.s32.totalorder %s26, 1
      %p61 = por %p59, %p60
      %p63 = scmp.ne.s32.totalorder %s46, %s62
      %p64 = scmp.eq.s32.totalorder %s26, 0
      %p65 = por %p63, %p64
      %s66 = ssub.s32 %s27, %s39
      %p67 = scmp.eq.s32.totalorder %s66, 0
      %s69 = sadd.s32 %s68, 1
      %s70 = scalar_select %p67, %s68, %s69
      %p73 = pneg %p67
      %p74 = scmp.eq.s32.totalorder %s20, 1
      %p75 = por %p73, %p74
      %p76 = scmp.ne.s32.totalorder %s68, %s71
      %p77 = scmp.eq.s32.totalorder %s20, 0
      %p78 = por %p76, %p77
      %p79 = scmp.ne.s32.totalorder %s68, %s71
      %p80 = scmp.eq.s32.totalorder %s25, 1
      %p81 = por %p79, %p80
      %p82 = scmp.ne.s32.totalorder %s71, %s72
      %p83 = scmp.eq.s32.totalorder %s25, 0
      %p84 = por %p82, %p83
      %p85 = scmp.ne.s32.totalorder %s71, %s72
      %p86 = scmp.eq.s32.totalorder %s26, 1
      %p87 = por %p85, %p86
      %p89 = scmp.ne.s32.totalorder %s72, %s88
      %p90 = scmp.eq.s32.totalorder %s26, 0
      %p91 = por %p89, %p90
      %s92 = ssub.s32 %s27, %s39
      %s93 = ssub.s32 %s28, %s35
      %s94 = sor.u32 %s92, %s93
      %p95 = scmp.eq.s32.totalorder %s94, 0
      %s97 = sadd.s32 %s96, 1
      %s98 = scalar_select %p95, %s96, %s97
      %p101 = pneg %p95
      %p102 = scmp.eq.s32.totalorder %s20, 1
      %p103 = por %p101, %p102
      %p104 = scmp.ne.s32.totalorder %s96, %s99
      %p105 = scmp.eq.s32.totalorder %s20, 0
      %p106 = por %p104, %p105
      %p107 = scmp.ne.s32.totalorder %s96, %s99
      %p108 = scmp.eq.s32.totalorder %s25, 1
      %p109 = por %p107, %p108
      %p110 = scmp.ne.s32.totalorder %s99, %s100
      %p111 = scmp.eq.s32.totalorder %s25, 0
      %p112 = por %p110, %p111
      %p113 = scmp.ne.s32.totalorder %s99, %s100
      %p114 = scmp.eq.s32.totalorder %s26, 1
      %p115 = por %p113, %p114
      %p117 = scmp.ne.s32.totalorder %s100, %s116
      %p118 = scmp.eq.s32.totalorder %s26, 0
      %p119 = por %p117, %p118
      %s120 = ssub.s32 %s27, %s39
      %s121 = ssub.s32 %s28, %s35
      %s122 = sor.u32 %s120, %s121
      %p123 = scmp.eq.s32.totalorder %s122, 0
      %s125 = sadd.s32 %s124, 1
      %s126 = scalar_select %p123, %s124, %s125
      %p129 = pneg %p123
      %p130 = scmp.eq.s32.totalorder %s20, 1
      %p131 = por %p129, %p130
      %p132 = scmp.ne.s32.totalorder %s124, %s127
      %p133 = scmp.eq.s32.totalorder %s20, 0
      %p134 = por %p132, %p133
      %p135 = scmp.ne.s32.totalorder %s124, %s127
      %p136 = scmp.eq.s32.totalorder %s25, 1
      %p137 = por %p135, %p136
      %p138 = scmp.ne.s32.totalorder %s127, %s128
      %p139 = scmp.eq.s32.totalorder %s25, 0
      %p140 = por %p138, %p139
      %p141 = scmp.ne.s32.totalorder %s127, %s128
      %p142 = scmp.eq.s32.totalorder %s26, 1
      %p143 = por %p141, %p142
      %p145 = scmp.ne.s32.totalorder %s128, %s144
      %p146 = scmp.eq.s32.totalorder %s26, 0
      %p147 = por %p145, %p146
      %s148 = ssub.s32 %s27, %s39
      %s149 = ssub.s32 %s28, %s35
      %s150 = sor.u32 %s148, %s149
      %p151 = scmp.eq.s32.totalorder %s150, 0
      %s153 = sadd.s32 %s152, 1
      %s154 = scalar_select %p151, %s152, %s153
      %p157 = pneg %p151
      %p158 = scmp.eq.s32.totalorder %s20, 1
      %p159 = por %p157, %p158
      %p160 = scmp.ne.s32.totalorder %s152, %s155
      %p161 = scmp.eq.s32.totalorder %s20, 0
      %p162 = por %p160, %p161
      %p163 = scmp.ne.s32.totalorder %s152, %s155
      %p164 = scmp.eq.s32.totalorder %s25, 1
      %p165 = por %p163, %p164
      %p166 = scmp.ne.s32.totalorder %s155, %s156
      %p167 = scmp.eq.s32.totalorder %s25, 0
      %p168 = por %p166, %p167
      %p169 = scmp.ne.s32.totalorder %s155, %s156
      %p170 = scmp.eq.s32.totalorder %s26, 1
      %p171 = por %p169, %p170
      %p173 = scmp.ne.s32.totalorder %s156, %s172
      %p174 = scmp.eq.s32.totalorder %s26, 0
      %p175 = por %p173, %p174
      %s176 = ssub.s32 %s27, %s39
      %s177 = ssub.s32 %s28, %s35
      %s178 = sor.u32 %s176, %s177
      %p179 = scmp.eq.s32.totalorder %s178, 0
      %s181 = sadd.s32 %s180, 1
      %s182 = scalar_select %p179, %s180, %s181
      %p185 = pneg %p179
      %p186 = scmp.eq.s32.totalorder %s20, 1
      %p187 = por %p185, %p186
      %p188 = scmp.ne.s32.totalorder %s180, %s183
      %p189 = scmp.eq.s32.totalorder %s20, 0
      %p190 = por %p188, %p189
      %p191 = scmp.ne.s32.totalorder %s180, %s183
      %p192 = scmp.eq.s32.totalorder %s25, 1
      %p193 = por %p191, %p192
      %p194 = scmp.ne.s32.totalorder %s183, %s184
      %p195 = scmp.eq.s32.totalorder %s25, 0
      %p196 = por %p194, %p195
      %p197 = scmp.ne.s32.totalorder %s183, %s184
      %p198 = scmp.eq.s32.totalorder %s26, 1
      %p199 = por %p197, %p198
      %p201 = scmp.ne.s32.totalorder %s184, %s200
      %p202 = scmp.eq.s32.totalorder %s26, 0
      %p203 = por %p201, %p202
      %p204 = scmp.le.s32.totalorder 1, %s20
      %p205 = scmp.lt.s32.totalorder %s20, 3
      %p206 = pnand %p204, %p205
      %p207 = pneg %p206
      // Predicated region
      $region9: #{tpu_custom_call.1} parent=5 // pred_check
        _
      $region10: #{tpu_custom_call.1} parent=5 // pred_check_branch
        %209 = sbr.rel (%p206) target = $region12
      $region11: #{tpu_custom_call.1} parent=5 // pred_region
        %s210 = ssub.s32 %s20, 1
        // Predicated region
        $region13: #{tpu_custom_call.1} parent=11 // pred_check
          %p211 = pneg %p58
        $region14: #{tpu_custom_call.1} parent=11 // pred_check_branch
          %213 = sbr.rel (%p211) target = $region16
        $region15: #{tpu_custom_call.1} parent=11 // pred_region
          %p214 = scmp.lt.s32.totalorder %s29, 0
          %s215 = scalar_select %p214, %s29, 0
          %s216 = smul.addr %s215, 8
          %s217 = scalar_lea.vmem %s0, %s216
        $region16: #{tpu_custom_call.1} parent=11 // pred_fallthru
          _
        // Predicated region
        $region17: #{tpu_custom_call.1} parent=11 // pred_check
          %p218 = pneg %p84
        $region18: #{tpu_custom_call.1} parent=11 // pred_check_branch
          %220 = sbr.rel (%p218) target = $region20
        $region19: #{tpu_custom_call.1} parent=11 // pred_region
          %p221 = scmp.lt.s32.totalorder %s29, 0
          %s222 = scalar_select %p221, %s29, 0
          %s223 = smul.addr %s222, 8
          %s224 = scalar_lea.vmem %s1, %s223
        $region20: #{tpu_custom_call.1} parent=11 // pred_fallthru
          _
      $region12: #{tpu_custom_call.1} parent=5 // pred_fallthru
        _
      %p225 = scmp.lt.s32.totalorder %s20, 2
      // Predicated region
      $region21: #{tpu_custom_call.1} parent=5 // pred_check
        %p226 = pneg %p225
      $region22: #{tpu_custom_call.1} parent=5 // pred_check_branch
        %228 = sbr.rel (%p226) target = $region24
      $region23: #{tpu_custom_call.1} parent=5 // pred_region
        // Predicated region
        $region25: #{tpu_custom_call.1} parent=23 // pred_check
          %p229 = pneg %p106
        $region26: #{tpu_custom_call.1} parent=23 // pred_check_branch
          %231 = sbr.rel (%p229) target = $region28
        $region27: #{tpu_custom_call.1} parent=23 // pred_region
          %p232 = scmp.lt.s32.totalorder %s27, 0
          %s233 = scalar_select %p232, %s27, 0
          %p234 = scmp.lt.s32.totalorder %s28, 1
          %s235 = scalar_select %p234, %s28, 1
          %s236 = smul.addr %s233, 2
          %s237 = sadd.s32 %s235, %s236
          %s238 = smul.addr %s237, 8
          %s239 = scalar_lea.vmem %s2, %s238
        $region28: #{tpu_custom_call.1} parent=23 // pred_fallthru
          _
        // Predicated region
        $region29: #{tpu_custom_call.1} parent=23 // pred_check
          %p240 = pneg %p134
        $region30: #{tpu_custom_call.1} parent=23 // pred_check_branch
          %242 = sbr.rel (%p240) target = $region32
        $region31: #{tpu_custom_call.1} parent=23 // pred_region
          %s243 = sand.u32 %s124, 1
          %s244 = scalar_lea.sflag [#allocation3], %s243
          %s245 = sand.u32 %s124, 1
          %s246 = smul.addr %s245, 8
          %s247 = scalar_lea.vmem [#allocation2], %s246
          %249 = vsyncadd %s244, 0
          %s250 = smul.addr %s27, 2
          %s251 = sadd.s32 %s28, %s250
          %s252 = smul.addr %s251, 8
          %s253 = scalar_lea.hbm %s3, %s252
          %s255 = sshll.u32 %s253, 4
          %s256 = int_to_ptr.hbm [resolvable:$true] %s255
          %s257 = sshll.u32 %s247, 4
          %s258 = int_to_ptr.vmem [resolvable:$true] %s257
          %260 = dma.hbm_to_vmem [thread:$0]  %s256, 128, %s258, %s244
        $region32: #{tpu_custom_call.1} parent=23 // pred_fallthru
          _
        // Predicated region
        $region33: #{tpu_custom_call.1} parent=23 // pred_check
          %p261 = pneg %p162
        $region34: #{tpu_custom_call.1} parent=23 // pred_check_branch
          %263 = sbr.rel (%p261) target = $region36
        $region35: #{tpu_custom_call.1} parent=23 // pred_region
          %s264 = sand.u32 %s152, 1
          %s265 = scalar_lea.sflag [#allocation6], %s264
          %s266 = sand.u32 %s152, 1
          %s267 = smul.addr %s266, 8
          %s268 = scalar_lea.vmem [#allocation5], %s267
          %270 = vsyncadd %s265, 0
          %s271 = smul.addr %s27, 2
          %s272 = sadd.s32 %s28, %s271
          %s273 = smul.addr %s272, 8
          %s274 = scalar_lea.hbm %s4, %s273
          %s276 = sshll.u32 %s274, 4
          %s277 = int_to_ptr.hbm [resolvable:$true] %s276
          %s278 = sshll.u32 %s268, 4
          %s279 = int_to_ptr.vmem [resolvable:$true] %s278
          %281 = dma.hbm_to_vmem [thread:$0]  %s277, 128, %s279, %s265
        $region36: #{tpu_custom_call.1} parent=23 // pred_fallthru
          _
      $region24: #{tpu_custom_call.1} parent=5 // pred_fallthru
        _
      %p282 = scmp.le.s32.totalorder 1, %s20
      %p283 = scmp.lt.s32.totalorder %s20, 3
      %p284 = pnand %p282, %p283
      %p285 = pneg %p284
      // Predicated region
      $region37: #{tpu_custom_call.1} parent=5 // pred_check
        _
      $region38: #{tpu_custom_call.1} parent=5 // pred_check_branch
        %287 = sbr.rel (%p284) target = $region40
      $region39: #{tpu_custom_call.1} parent=5 // pred_region
        %s288 = ssub.s32 %s20, 1
        %s289 = sand.u32 %s127, 1
        %s290 = scalar_lea.sflag [#allocation3], %s289
        %s291 = sand.u32 %s127, 1
        %s292 = smul.addr %s291, 8
        %s293 = scalar_lea.vmem [#allocation2], %s292
        // Predicated region
        $region41: #{tpu_custom_call.1} parent=39 // pred_check
          %p294 = pneg %p140
        $region42: #{tpu_custom_call.1} parent=39 // pred_check_branch
          %296 = sbr.rel (%p294) target = $region44
        $region43: #{tpu_custom_call.1} parent=39 // pred_region
          %298 = dma.done %s290, 128
        $region44: #{tpu_custom_call.1} parent=39 // pred_fallthru
          _
        %s299 = sand.u32 %s155, 1
        %s300 = scalar_lea.sflag [#allocation6], %s299
        %s301 = sand.u32 %s155, 1
        %s302 = smul.addr %s301, 8
        %s303 = scalar_lea.vmem [#allocation5], %s302
        // Predicated region
        $region45: #{tpu_custom_call.1} parent=39 // pred_check
          %p304 = pneg %p168
        $region46: #{tpu_custom_call.1} parent=39 // pred_check_branch
          %306 = sbr.rel (%p304) target = $region48
        $region47: #{tpu_custom_call.1} parent=39 // pred_region
          %308 = dma.done %s300, 128
        $region48: #{tpu_custom_call.1} parent=39 // pred_fallthru
          _
        %p309 = scmp.lt.s32.totalorder %s29, 0
        %s310 = scalar_select %p309, %s29, 0
        %s311 = smul.addr %s310, 8
        %s312 = scalar_lea.vmem %s0, %s311
        %p313 = pneg %p58
        %p314 = pneg %p55
        %p315 = scmp.lt.s32.totalorder %s29, 0
        %s316 = scalar_select %p315, %s29, 0
        %s317 = smul.addr %s316, 8
        %s318 = scalar_lea.vmem %s1, %s317
        %p319 = pneg %p84
        %p320 = pneg %p81
        %p321 = scmp.lt.s32.totalorder %s29, 0
        %s322 = scalar_select %p321, %s29, 0
        %p323 = scmp.lt.s32.totalorder %s30, 1
        %s324 = scalar_select %p323, %s30, 1
        %s325 = smul.addr %s322, 2
        %s326 = sadd.s32 %s324, %s325
        %s327 = smul.addr %s326, 8
        %s328 = scalar_lea.vmem %s2, %s327
        %p329 = pneg %p112
        %p330 = pneg %p109
        %s331 = sand.u32 %s127, 1
        %s332 = scalar_lea.sflag [#allocation3], %s331
        %s333 = sand.u32 %s127, 1
        %s334 = smul.addr %s333, 8
        %s335 = scalar_lea.vmem [#allocation2], %s334
        %p336 = pneg %p140
        %p337 = pneg %p137
        %s338 = sand.u32 %s155, 1
        %s339 = scalar_lea.sflag [#allocation6], %s338
        %s340 = sand.u32 %s155, 1
        %s341 = smul.addr %s340, 8
        %s342 = scalar_lea.vmem [#allocation5], %s341
        %p343 = pneg %p168
        %p344 = pneg %p165
        %p345 = pneg %p196
        %p346 = pneg %p193
        %s347 = sand.u32 %s183, 1
        %s348 = scalar_lea.sflag [#allocation4], %s347
        %s349 = sand.u32 %s183, 1
        %s350 = smul.addr %s349, 8
        %s351 = scalar_lea.vmem [#allocation7], %s350
        %p352 = scmp.lt.s32.totalorder %s29, 0
        %s353 = scalar_select %p352, %s29, 0
        %s354 = smul.addr %s353, 8
        %s355 = scalar_lea.vmem %s0, %s354
        %p356 = scmp.lt.s32.totalorder %s29, 0
        %s357 = scalar_select %p356, %s29, 0
        %s358 = smul.addr %s357, 8
        %s359 = scalar_lea.vmem %s1, %s358
        %p360 = scmp.lt.s32.totalorder %s29, 0
        %s361 = scalar_select %p360, %s29, 0
        %p362 = scmp.lt.s32.totalorder %s30, 1
        %s363 = scalar_select %p362, %s30, 1
        %s364 = smul.addr %s361, 2
        %s365 = sadd.s32 %s363, %s364
        %s366 = smul.addr %s365, 8
        %s367 = scalar_lea.vmem %s2, %s366
        %v368 = vld [vmem:[%s355] sm:$0xff]
        %v369 = vld [vmem:[%s367] sm:$0xff]
        %371 = vset.pattern.permute.xlu0 0
        %372 = vperm.xlu0 %371, %v368
        %v373 = vpop.permute.xlu0 %372
        %v375 = vmul.f32 %v373, %v369
        %v376 = vld [vmem:[%s293] sm:$0xff]
        %377 = vset.pattern.permute.xlu0 1
        %378 = vperm.xlu0 %377, %v368
        %v379 = vpop.permute.xlu0 %378
        %v381 = vmul.f32 %v379, %v376
        %v382 = vadd.f32 %v375, %v381
        %v383 = vld [vmem:[%s303] sm:$0xff]
        %384 = vset.pattern.permute.xlu0 2
        %385 = vperm.xlu0 %384, %v368
        %v386 = vpop.permute.xlu0 %385
        %v388 = vmul.f32 %v386, %v383
        %v389 = vadd.f32 %v382, %v388
        %v390 = vld [vmem:[%s359] sm:$0xff]
        %392 = vset.pattern.permute.xlu0 0
        %393 = vperm.xlu0 %392, %v390
        %v394 = vpop.permute.xlu0 %393
        %v396 = vadd.f32 %v389, %v394
        %397 = vst [vmem:[%s351] sm:$0xff] %v396
        %s398 = sand.u32 %s183, 1
        %s399 = scalar_lea.sflag [#allocation4], %s398
        %s400 = sand.u32 %s183, 1
        %s401 = smul.addr %s400, 8
        %s402 = scalar_lea.vmem [#allocation7], %s401
        // Predicated region
        $region49: #{tpu_custom_call.1} parent=39 // pred_check
          %p403 = pneg %p193
        $region50: #{tpu_custom_call.1} parent=39 // pred_check_branch
          %405 = sbr.rel (%p403) target = $region52
        $region51: #{tpu_custom_call.1} parent=39 // pred_region
          %407 = vsyncadd %s399, 0
          %s408 = smul.addr %s29, 2
          %s409 = sadd.s32 %s30, %s408
          %s410 = smul.addr %s409, 8
          %s411 = scalar_lea.hbm %s5, %s410
          %s413 = sshll.u32 %s402, 4
          %s414 = int_to_ptr.vmem [resolvable:$true] %s413
          %s415 = sshll.u32 %s411, 4
          %s416 = int_to_ptr.hbm [resolvable:$true] %s415
          %418 = dma.vmem_to_hbm [thread:$0]  %s414, 128, %s416, %s399
        $region52: #{tpu_custom_call.1} parent=39 // pred_fallthru
          _
      $region40: #{tpu_custom_call.1} parent=5 // pred_fallthru
        _
      %p419 = scmp.le.s32.totalorder 2, %s20
      // Predicated region
      $region53: #{tpu_custom_call.1} parent=5 // pred_check
        %p420 = pneg %p419
      $region54: #{tpu_custom_call.1} parent=5 // pred_check_branch
        %422 = sbr.rel (%p420) target = $region56
      $region55: #{tpu_custom_call.1} parent=5 // pred_region
        %s423 = ssub.s32 %s20, 2
        // Predicated region
        $region57: #{tpu_custom_call.1} parent=55 // pred_check
          %p424 = pneg %p199
        $region58: #{tpu_custom_call.1} parent=55 // pred_check_branch
          %426 = sbr.rel (%p424) target = $region60
        $region59: #{tpu_custom_call.1} parent=55 // pred_region
          %s427 = sand.u32 %s184, 1
          %s428 = scalar_lea.sflag [#allocation4], %s427
          %s429 = sand.u32 %s184, 1
          %s430 = smul.addr %s429, 8
          %s431 = scalar_lea.vmem [#allocation7], %s430
          %433 = dma.done %s428, 128
        $region60: #{tpu_custom_call.1} parent=55 // pred_fallthru
          _
      $region56: #{tpu_custom_call.1} parent=5 // pred_fallthru
        _
    $region6: #{tpu_custom_call.1} parent=1 // loop_footer
      %s24 = sadd.s32 1, %s20
    $region7: #{tpu_custom_call.1} parent=1 // loop_footer_branch
      %19 = sbr.rel target = $region3
    $region8: #{tpu_custom_call.1} parent=1 // loop_exit
      _
    %434 = vsyncpa [#allocation3], 1
    %s435 = scalar_lea.sflag [#allocation3], 1
    %436 = vsyncpa %s435, 1
    %437 = vsyncpa [#allocation6], 1
    %s438 = scalar_lea.sflag [#allocation6], 1
    %439 = vsyncpa %s438, 1
    %440 = vsyncpa [#allocation4], 1
    %s441 = scalar_lea.sflag [#allocation4], 1
    %442 = vsyncpa %s441, 1

</llo_original>
